<compile_context>
chip_gen: v6e
topology: v6e:2x2x1
jax: 0.10.0
libtpu: 0.0.40
codegen_flags: <defaults>
</compile_context>

<pallas_src>
import jax
import jax.numpy as jnp
from jax.experimental import pallas as pl
from jax.experimental.pallas import tpu as pltpu


def _vdp_kv_kernel(x_ref, vx_ref, wm_ref, wsw_ref, wv2_ref, mu_ref, var_ref):
    """One (tm, tn) output tile, accumulating over the K (model-dim) grid axis.

    wm_ref  : [tk, tn] fused [Wk.T | Wv.T] slice              (mean weights)
    wsw_ref : [tk, tn] fused [Swk.T | Swv.T] slice            (weight variance)
    wv2_ref : [tk, tn] fused [(Wk^2+Swk).T | (Wv^2+Swv).T]    (precombined)

    Outputs are f32 and stay VMEM-resident across the k axis, so we accumulate
    straight into them (no scratch).
    """
    k_id = pl.program_id(2)

    @pl.when(k_id == 0)
    def _init():
        mu_ref[...] = jnp.zeros_like(mu_ref)
        var_ref[...] = jnp.zeros_like(var_ref)

    x = x_ref[...]
    vx = vx_ref[...]
    x2 = x * x

    mu_ref[...] += jnp.dot(x, wm_ref[...], preferred_element_type=jnp.float32)
    var_ref[...] += (
        jnp.dot(x2, wsw_ref[...], preferred_element_type=jnp.float32)
        + jnp.dot(vx, wv2_ref[...], preferred_element_type=jnp.float32)
    )


def _pick_tile(n, candidates):
    """Largest candidate tile that divides n; else n (full dim is legal)."""
    for c in candidates:
        if c <= n and n % c == 0:
            return c
    return n


def final_head_vdp(x, var_x, wk, swk, wv, swv, h):
    """x, var_x: (B, N, d) f32.  wk/swk/wv/swv: (d_out, d) (nn.Linear layout).
    Returns (k, var_k, v, var_v), each (B, h, N, d_out // h)."""
    B, N, d = x.shape
    d_out = wk.shape[0]
    assert d_out % h == 0
    M = B * N
    Ncat = 2 * d_out
    f32 = jnp.float32

    # ---- one-time wrapper-side weight prep (hoisted out of the kernel) ----
    # pre-transpose to [d, d_out], fuse K|V along output dim, precombine W^2+Sw
    w_mu = jnp.concatenate([wk.T, wv.T], axis=1).astype(f32)            # [d, 2*d_out]
    w_sw = jnp.concatenate([swk.T, swv.T], axis=1).astype(f32)           # [d, 2*d_out]
    w_v2 = jnp.concatenate([(wk * wk + swk).T,
                            (wv * wv + swv).T], axis=1).astype(f32)      # [d, 2*d_out]

    xm = x.reshape(M, d).astype(f32)
    vxm = var_x.reshape(M, d).astype(f32)

    # pad rows to a multiple of 8 sublanes if needed (zero rows -> zero output)
    M_pad = -(-M // 8) * 8
    if M_pad != M:
        pad = ((0, M_pad - M), (0, 0))
        xm = jnp.pad(xm, pad)
        vxm = jnp.pad(vxm, pad)

    # tile selection: big M tile for MXU occupancy, lane-dense N tile,
    # K tile only when d is large enough to need it.
    tm = _pick_tile(M_pad, (512, 256, 128, 64, 32, 16, 8))
    tn = _pick_tile(Ncat, (512, 256, 128))
    tk = _pick_tile(d, (1024, 512, 256, 128))

    grid = (M_pad // tm, Ncat // tn, d // tk)

    x_spec = pl.BlockSpec((tm, tk), lambda i, j, k: (i, k))
    w_spec = pl.BlockSpec((tk, tn), lambda i, j, k: (k, j))
    out_spec = pl.BlockSpec((tm, tn), lambda i, j, k: (i, j))
    out_sds = jax.ShapeDtypeStruct((M_pad, Ncat), f32)

    mu_cat, var_cat = pl.pallas_call(
        _vdp_kv_kernel,
        out_shape=(out_sds, out_sds),
        grid_spec=pltpu.PrefetchScalarGridSpec(
            num_scalar_prefetch=0,
            grid=grid,
            in_specs=[x_spec, x_spec, w_spec, w_spec, w_spec],
            out_specs=(out_spec, out_spec),
        ),
        compiler_params=pltpu.CompilerParams(
            dimension_semantics=("parallel", "parallel", "arbitrary"),
            vmem_limit_bytes=64 * 1024 * 1024,
        ),
    )(xm, vxm, w_mu, w_sw, w_v2)

    if M_pad != M:
        mu_cat = mu_cat[:M]
        var_cat = var_cat[:M]

    d_k = d_out // h

    def to_heads(t):
        # (M, d_out) -> (B, N, h, d_k) -> (B, h, N, d_k)   [= .transpose(1, 2)]
        return t.reshape(B, N, h, d_k).transpose(0, 2, 1, 3)

    k = to_heads(mu_cat[:, :d_out])
    vk = to_heads(var_cat[:, :d_out])
    v = to_heads(mu_cat[:, d_out:])
    vv = to_heads(var_cat[:, d_out:])
    return k, vk, v, vv


def _reference(x, var_x, wk, swk, wv, swv, h):
    B, N, d = x.shape

    def lin_vdp(w, sw):
        mu = jnp.einsum("bnd,od->bno", x, w)
        var = (jnp.einsum("bnd,od->bno", x * x, sw)
               + jnp.einsum("bnd,od->bno", var_x, w * w + sw))
        return mu, var

    def to_heads(t):
        return t.reshape(B, N, h, -1).transpose(0, 2, 1, 3)

    k, vk = lin_vdp(wk, swk)
    v, vv = lin_vdp(wv, swv)
    return to_heads(k), to_heads(vk), to_heads(v), to_heads(vv)


def _make_inputs(key, B, N, d, var_init):
    kx, kvx, kwk, kwv = jax.random.split(key, 4)
    x = jax.random.normal(kx, (B, N, d), dtype=jnp.float32)
    var_x = jnp.abs(jax.random.normal(kvx, (B, N, d), dtype=jnp.float32)) * 0.1
    bound = 1.0 / (d ** 0.5)
    wk = jax.random.uniform(kwk, (d, d), jnp.float32, -bound, bound)
    wv = jax.random.uniform(kwv, (d, d), jnp.float32, -bound, bound)
    swk = jnp.full((d, d), var_init, dtype=jnp.float32)
    swv = jnp.full((d, d), var_init, dtype=jnp.float32)
    return x, var_x, wk, swk, wv, swv


def _check(B, N, d, h, var_init=1e-8, atol=1e-4, rtol=1e-4, seed=0):
    key = jax.random.PRNGKey(seed)
    x, var_x, wk, swk, wv, swv = _make_inputs(key, B, N, d, var_init)

    outs = final_head_vdp(x, var_x, wk, swk, wv, swv, h)
    outs = jax.block_until_ready(outs)
    refs = _reference(x, var_x, wk, swk, wv, swv, h)

    d_k = d // h
    for o, r in zip(outs, refs):
        assert o.shape == (B, h, N, d_k), (o.shape, (B, h, N, d_k))
        assert jnp.allclose(o, r, atol=atol, rtol=rtol), float(
            jnp.max(jnp.abs(o - r)))


if __name__ == "__main__":
    # Small config matching the module (h heads, model dim d, d % h == 0).
    _check(B=2, N=8, d=32, h=4)
    # Moderate config exercising M/N/K grid tiling + output-resident accumulation.
    _check(B=2, N=64, d=384, h=6, seed=1)
    print("KERNEL_OK")
</pallas_src>

<mosaic_0001>
module attributes {stable_mosaic.version = 11 : i64} {
  func.func @_vdp_kv_kernel(%arg0: i32, %arg1: i32, %arg2: i32, %arg3: memref<16x32xf32, #tpu.memory_space<vmem>>, %arg4: memref<16x32xf32, #tpu.memory_space<vmem>>, %arg5: memref<32x64xf32, #tpu.memory_space<vmem>>, %arg6: memref<32x64xf32, #tpu.memory_space<vmem>>, %arg7: memref<32x64xf32, #tpu.memory_space<vmem>>, %arg8: memref<16x64xf32, #tpu.memory_space<vmem>>, %arg9: memref<16x64xf32, #tpu.memory_space<vmem>>) attributes {dimension_semantics = [#tpu.dimension_semantics<parallel>, #tpu.dimension_semantics<parallel>, #tpu.dimension_semantics<arbitrary>], iteration_bounds = array<i64: 1, 1, 1>, scalar_prefetch = 0 : i64, scratch_operands = 0 : i64, tpu.core_type = #tpu.core_type<tc>, window_params = [{transform_indices = @transform_0, window_bounds = array<i64: 16, 32>}, {transform_indices = @transform_1, window_bounds = array<i64: 16, 32>}, {transform_indices = @transform_2, window_bounds = array<i64: 32, 64>}, {transform_indices = @transform_3, window_bounds = array<i64: 32, 64>}, {transform_indices = @transform_4, window_bounds = array<i64: 32, 64>}, {transform_indices = @transform_5, window_bounds = array<i64: 16, 64>}, {transform_indices = @transform_6, window_bounds = array<i64: 16, 64>}]} {
    %c0_i32 = arith.constant 0 : i32
    %0 = arith.cmpi eq, %arg2, %c0_i32 : i32
    %1 = arith.extui %0 : i1 to i32
    %c0_i32_0 = arith.constant 0 : i32
    %2 = arith.cmpi ne, %1, %c0_i32_0 : i32
    scf.if %2 {
      %cst_20 = arith.constant 0.000000e+00 : f32
      %19 = vector.broadcast %cst_20 : f32 to vector<16x64xf32>
      %c0_21 = arith.constant 0 : index
      %c0_22 = arith.constant 0 : index
      %20 = vector.load %arg8[%c0_21, %c0_22] : memref<16x64xf32, #tpu.memory_space<vmem>>, vector<16x64xf32>
      tpu.vector_store %arg8[%c0_21, %c0_22], %19 {strides = array<i32>} : memref<16x64xf32, #tpu.memory_space<vmem>>, vector<16x64xf32>,
      %cst_23 = arith.constant 0.000000e+00 : f32
      %21 = vector.broadcast %cst_23 : f32 to vector<16x64xf32>
      %c0_24 = arith.constant 0 : index
      %c0_25 = arith.constant 0 : index
      %22 = vector.load %arg9[%c0_24, %c0_25] : memref<16x64xf32, #tpu.memory_space<vmem>>, vector<16x64xf32>
      tpu.vector_store %arg9[%c0_24, %c0_25], %21 {strides = array<i32>} : memref<16x64xf32, #tpu.memory_space<vmem>>, vector<16x64xf32>,
    } else {
    }
    %c0 = arith.constant 0 : index
    %c0_1 = arith.constant 0 : index
    %3 = vector.load %arg3[%c0, %c0_1] : memref<16x32xf32, #tpu.memory_space<vmem>>, vector<16x32xf32>
    %c0_2 = arith.constant 0 : index
    %c0_3 = arith.constant 0 : index
    %4 = vector.load %arg4[%c0_2, %c0_3] : memref<16x32xf32, #tpu.memory_space<vmem>>, vector<16x32xf32>
    %5 = arith.mulf %3, %3 : vector<16x32xf32>
    %c0_4 = arith.constant 0 : index
    %c0_5 = arith.constant 0 : index
    %6 = vector.load %arg8[%c0_4, %c0_5] : memref<16x64xf32, #tpu.memory_space<vmem>>, vector<16x64xf32>
    %c0_6 = arith.constant 0 : index
    %c0_7 = arith.constant 0 : index
    %7 = vector.load %arg5[%c0_6, %c0_7] : memref<32x64xf32, #tpu.memory_space<vmem>>, vector<32x64xf32>
    %cst = arith.constant dense<0.000000e+00> : vector<16x64xf32>
    %8 = tpu.matmul %3, %7, %cst {dimension_numbers = #tpu.dot_dimension_numbers<[1], [0], [0], [1], [0, 0, 1, 1], [], []>} : vector<16x32xf32>, vector<32x64xf32>, vector<16x64xf32> -> vector<16x64xf32>
    %9 = arith.addf %6, %8 : vector<16x64xf32>
    %c0_8 = arith.constant 0 : index
    %c0_9 = arith.constant 0 : index
    %10 = vector.load %arg8[%c0_8, %c0_9] : memref<16x64xf32, #tpu.memory_space<vmem>>, vector<16x64xf32>
    tpu.vector_store %arg8[%c0_8, %c0_9], %9 {strides = array<i32>} : memref<16x64xf32, #tpu.memory_space<vmem>>, vector<16x64xf32>,
    %c0_10 = arith.constant 0 : index
    %c0_11 = arith.constant 0 : index
    %11 = vector.load %arg9[%c0_10, %c0_11] : memref<16x64xf32, #tpu.memory_space<vmem>>, vector<16x64xf32>
    %c0_12 = arith.constant 0 : index
    %c0_13 = arith.constant 0 : index
    %12 = vector.load %arg6[%c0_12, %c0_13] : memref<32x64xf32, #tpu.memory_space<vmem>>, vector<32x64xf32>
    %cst_14 = arith.constant dense<0.000000e+00> : vector<16x64xf32>
    %13 = tpu.matmul %5, %12, %cst_14 {dimension_numbers = #tpu.dot_dimension_numbers<[1], [0], [0], [1], [0, 0, 1, 1], [], []>} : vector<16x32xf32>, vector<32x64xf32>, vector<16x64xf32> -> vector<16x64xf32>
    %c0_15 = arith.constant 0 : index
    %c0_16 = arith.constant 0 : index
    %14 = vector.load %arg7[%c0_15, %c0_16] : memref<32x64xf32, #tpu.memory_space<vmem>>, vector<32x64xf32>
    %cst_17 = arith.constant dense<0.000000e+00> : vector<16x64xf32>
    %15 = tpu.matmul %4, %14, %cst_17 {dimension_numbers = #tpu.dot_dimension_numbers<[1], [0], [0], [1], [0, 0, 1, 1], [], []>} : vector<16x32xf32>, vector<32x64xf32>, vector<16x64xf32> -> vector<16x64xf32>
    %16 = arith.addf %13, %15 : vector<16x64xf32>
    %17 = arith.addf %11, %16 : vector<16x64xf32>
    %c0_18 = arith.constant 0 : index
    %c0_19 = arith.constant 0 : index
    %18 = vector.load %arg9[%c0_18, %c0_19] : memref<16x64xf32, #tpu.memory_space<vmem>>, vector<16x64xf32>
    tpu.vector_store %arg9[%c0_18, %c0_19], %17 {strides = array<i32>} : memref<16x64xf32, #tpu.memory_space<vmem>>, vector<16x64xf32>,
    return
  }
  func.func @transform_0(%arg0: i32, %arg1: i32, %arg2: i32) -> (i32, i32) {
    %c0_i32 = arith.constant 0 : i32
    return %arg0, %arg2 : i32, i32
  }
  func.func @transform_1(%arg0: i32, %arg1: i32, %arg2: i32) -> (i32, i32) {
    %c0_i32 = arith.constant 0 : i32
    return %arg0, %arg2 : i32, i32
  }
  func.func @transform_2(%arg0: i32, %arg1: i32, %arg2: i32) -> (i32, i32) {
    %c0_i32 = arith.constant 0 : i32
    return %arg2, %arg1 : i32, i32
  }
  func.func @transform_3(%arg0: i32, %arg1: i32, %arg2: i32) -> (i32, i32) {
    %c0_i32 = arith.constant 0 : i32
    return %arg2, %arg1 : i32, i32
  }
  func.func @transform_4(%arg0: i32, %arg1: i32, %arg2: i32) -> (i32, i32) {
    %c0_i32 = arith.constant 0 : i32
    return %arg2, %arg1 : i32, i32
  }
  func.func @transform_5(%arg0: i32, %arg1: i32, %arg2: i32) -> (i32, i32) {
    %c0_i32 = arith.constant 0 : i32
    return %arg0, %arg1 : i32, i32
  }
  func.func @transform_6(%arg0: i32, %arg1: i32, %arg2: i32) -> (i32, i32) {
    %c0_i32 = arith.constant 0 : i32
    return %arg0, %arg1 : i32, i32
  }
}

</mosaic_0001>

<llo_original>
// kernel: tpu_custom_call.1
$region0: #{tpu_custom_call.1}
  #allocation0 [shape = 'u32[]', space=smem, size = 0x4, offset = 0x4, fixed_abs, tag = 'smem constant byte address 0x4 - core index']
  #allocation1 [shape = 'u32[144,128]{1,0:T(1,128)}', space=vmem, size = 0x12000, scoped, tag = 'internal scratch']
  %s0 = inlined_call_operand.hbm [shape: f32[16,32], index: 0, kind: input, shape index: {}]
  %s1 = inlined_call_operand.hbm [shape: f32[16,32], index: 1, kind: input, shape index: {}]
  %s2 = inlined_call_operand.hbm [shape: f32[32,64], index: 2, kind: input, shape index: {}]
  %s3 = inlined_call_operand.hbm [shape: f32[32,64], index: 3, kind: input, shape index: {}]
  %s4 = inlined_call_operand.hbm [shape: f32[32,64], index: 4, kind: input, shape index: {}]
  %s5 = inlined_call_operand.hbm [shape: f32[16,64], index: 5, kind: output, shape index: {0}]
  %s6 = inlined_call_operand.hbm [shape: f32[16,64], index: 6, kind: output, shape index: {1}]
  %7 = xla_tuple %s5, %s6
  %s8 = sld [smem:[#allocation0]]
  $region62: #{tpu_custom_call.1} parent=0
    _
  %s10 = ssub.s32 1, %s8
  %s11 = scalar_select 0, %s10, %s8
  $region1: #{tpu_custom_call.1} parent=0
    #allocation2 [shape = 'u8[8192]{0}', space=vmem, size = 0x2000, scoped, tag = 'input window, operand 0, single buffered']
    #allocation3 [shape = 's32[1]{0}', space=sflag, size = 0x4, scoped, tag = 'scoped memory for tpu_custom_call.1']
    #allocation4 [shape = 's32[1]{0}', space=sflag, size = 0x4, scoped, tag = 'scoped memory for tpu_custom_call.1']
    #allocation5 [shape = 'u8[8192]{0}', space=vmem, size = 0x2000, scoped, tag = 'input window, operand 1, single buffered']
    #allocation6 [shape = 's32[1]{0}', space=sflag, size = 0x4, scoped, tag = 'scoped memory for tpu_custom_call.1']
    #allocation7 [shape = 'u8[16384]{0}', space=vmem, size = 0x4000, scoped, tag = 'input window, operand 2, single buffered']
    #allocation8 [shape = 'u8[16384]{0}', space=vmem, size = 0x4000, scoped, tag = 'input window, operand 3, single buffered']
    #allocation9 [shape = 's32[1]{0}', space=sflag, size = 0x4, scoped, tag = 'scoped memory for tpu_custom_call.1']
    #allocation10 [shape = 'u8[16384]{0}', space=vmem, size = 0x4000, scoped, tag = 'input window, operand 4, single buffered']
    #allocation11 [shape = 'u8[8192]{0}', space=vmem, size = 0x2000, scoped, tag = 'output window, operand 0, single buffered']
    #allocation12 [shape = 'u8[8192]{0}', space=vmem, size = 0x2000, scoped, tag = 'output window, operand 1, single buffered']
    #allocation13 [shape = 's32[1]{0}', space=sflag, size = 0x4, scoped, tag = 'scoped memory for tpu_custom_call.1']
    %12 = vsyncpa [#allocation3], 0
    %13 = vsyncpa [#allocation6], 0
    %14 = vsyncpa [#allocation9], 0
    %15 = vsyncpa [#allocation4], 0
    %16 = vsyncpa [#allocation13], 0
    // Predicated region
    $region2: #{tpu_custom_call.1} parent=1 // pred_check
      _
    $region3: #{tpu_custom_call.1} parent=1 // pred_check_branch
      %18 = sbr.rel (0) target = $region5
    $region4: #{tpu_custom_call.1} parent=1 // pred_region
      %s20 = ssub.s32 256, 256
      %21 = vsyncadd [#allocation3], %s20
      %s22 = sshll.u32 [#allocation2], 4
      %s23 = int_to_ptr.vmem [resolvable:$true] %s22
      %28 = dma.hbm_to_vmem [thread:$0]  %s0, 256, %s23, [#allocation3], 128, 128, 8
    $region5: #{tpu_custom_call.1} parent=1 // pred_fallthru
      _
    // Predicated region
    $region6: #{tpu_custom_call.1} parent=1 // pred_check
      _
    $region7: #{tpu_custom_call.1} parent=1 // pred_check_branch
      %30 = sbr.rel (0) target = $region9
    $region8: #{tpu_custom_call.1} parent=1 // pred_region
      %s32 = ssub.s32 256, 256
      %33 = vsyncadd [#allocation6], %s32
      %s34 = sshll.u32 [#allocation5], 4
      %s35 = int_to_ptr.vmem [resolvable:$true] %s34
      %40 = dma.hbm_to_vmem [thread:$0]  %s1, 256, %s35, [#allocation6], 128, 128, 8
    $region9: #{tpu_custom_call.1} parent=1 // pred_fallthru
      _
    // Predicated region
    $region10: #{tpu_custom_call.1} parent=1 // pred_check
      _
    $region11: #{tpu_custom_call.1} parent=1 // pred_check_branch
      %42 = sbr.rel (0) target = $region13
    $region12: #{tpu_custom_call.1} parent=1 // pred_region
      %s44 = ssub.s32 512, 512
      %45 = vsyncadd [#allocation6], %s44
      %s46 = sshll.u32 [#allocation7], 4
      %s47 = int_to_ptr.vmem [resolvable:$true] %s46
      %52 = dma.hbm_to_vmem [thread:$0]  %s2, 512, %s47, [#allocation6], 128, 128, 8
    $region13: #{tpu_custom_call.1} parent=1 // pred_fallthru
      _
    // Predicated region
    $region14: #{tpu_custom_call.1} parent=1 // pred_check
      _
    $region15: #{tpu_custom_call.1} parent=1 // pred_check_branch
      %54 = sbr.rel (0) target = $region17
    $region16: #{tpu_custom_call.1} parent=1 // pred_region
      %s56 = ssub.s32 512, 512
      %57 = vsyncadd [#allocation9], %s56
      %s58 = sshll.u32 [#allocation8], 4
      %s59 = int_to_ptr.vmem [resolvable:$true] %s58
      %64 = dma.hbm_to_vmem [thread:$0]  %s3, 512, %s59, [#allocation9], 128, 128, 8
    $region17: #{tpu_custom_call.1} parent=1 // pred_fallthru
      _
    // Predicated region
    $region18: #{tpu_custom_call.1} parent=1 // pred_check
      _
    $region19: #{tpu_custom_call.1} parent=1 // pred_check_branch
      %66 = sbr.rel (0) target = $region21
    $region20: #{tpu_custom_call.1} parent=1 // pred_region
      %s68 = ssub.s32 512, 512
      %69 = vsyncadd [#allocation9], %s68
      %s70 = sshll.u32 [#allocation10], 4
      %s71 = int_to_ptr.vmem [resolvable:$true] %s70
      %76 = dma.hbm_to_vmem [thread:$0]  %s4, 512, %s71, [#allocation9], 128, 128, 8
    $region21: #{tpu_custom_call.1} parent=1 // pred_fallthru
      _
    // Predicated region
    $region22: #{tpu_custom_call.1} parent=1 // pred_check
      _
    $region23: #{tpu_custom_call.1} parent=1 // pred_check_branch
      %78 = sbr.rel (0) target = $region25
    $region24: #{tpu_custom_call.1} parent=1 // pred_region
      %79 = dma.done [#allocation3], 256
    $region25: #{tpu_custom_call.1} parent=1 // pred_fallthru
      _
    // Predicated region
    $region26: #{tpu_custom_call.1} parent=1 // pred_check
      _
    $region27: #{tpu_custom_call.1} parent=1 // pred_check_branch
      %81 = sbr.rel (0) target = $region29
    $region28: #{tpu_custom_call.1} parent=1 // pred_region
      %82 = dma.done [#allocation6], 256
    $region29: #{tpu_custom_call.1} parent=1 // pred_fallthru
      _
    // Predicated region
    $region30: #{tpu_custom_call.1} parent=1 // pred_check
      _
    $region31: #{tpu_custom_call.1} parent=1 // pred_check_branch
      %84 = sbr.rel (0) target = $region33
    $region32: #{tpu_custom_call.1} parent=1 // pred_region
      %85 = dma.done [#allocation6], 512
    $region33: #{tpu_custom_call.1} parent=1 // pred_fallthru
      _
    // Predicated region
    $region34: #{tpu_custom_call.1} parent=1 // pred_check
      _
    $region35: #{tpu_custom_call.1} parent=1 // pred_check_branch
      %87 = sbr.rel (0) target = $region37
    $region36: #{tpu_custom_call.1} parent=1 // pred_region
      %88 = dma.done [#allocation9], 512
    $region37: #{tpu_custom_call.1} parent=1 // pred_fallthru
      _
    // Predicated region
    $region38: #{tpu_custom_call.1} parent=1 // pred_check
      _
    $region39: #{tpu_custom_call.1} parent=1 // pred_check_branch
      %90 = sbr.rel (0) target = $region41
    $region40: #{tpu_custom_call.1} parent=1 // pred_region
      %91 = dma.done [#allocation9], 512
    $region41: #{tpu_custom_call.1} parent=1 // pred_fallthru
      _
    %p92 = scmp.eq.s32.totalorder 0, 0
    // Predicated region
    $region42: #{tpu_custom_call.1} parent=1 // pred_check
      %p93 = pneg %p92
    $region43: #{tpu_custom_call.1} parent=1 // pred_check_branch
      %95 = sbr.rel (%p93) target = $region45
    $region44: #{tpu_custom_call.1} parent=1 // pred_region
      %vm96 = vcmask 523264
      %97 = vst.msk [vmem:[#allocation11] sm:$0xff] %vm96, 0.0
      %98 = vst.msk [vmem:[#allocation11 + $0x8] sm:$0xff] %vm96, 0.0
      %99 = vst.msk [vmem:[#allocation12] sm:$0xff] %vm96, 0.0
      %100 = vst.msk [vmem:[#allocation12 + $0x8] sm:$0xff] %vm96, 0.0
    $region45: #{tpu_custom_call.1} parent=1 // pred_fallthru
      _
    %v101 = vld [vmem:[#allocation2] sm:$0xff]
    %v102 = vld [vmem:[#allocation2 + $0x8] sm:$0xff]
    %v103 = vld [vmem:[#allocation5] sm:$0xff]
    %v104 = vld [vmem:[#allocation5 + $0x8] sm:$0xff]
    %v105 = vmul.f32 %v101, %v101
    %v106 = vmul.f32 %v102, %v102
    %v107 = vld [vmem:[#allocation11] sm:$0xff]
    %v108 = vld [vmem:[#allocation11 + $0x8] sm:$0xff]
    %v109 = vld [vmem:[#allocation7] sm:$0xff]
    %v110 = vld [vmem:[#allocation7 + $0x8] sm:$0xff]
    %v111 = vld [vmem:[#allocation7 + $0x10] sm:$0xff]
    %v112 = vld [vmem:[#allocation7 + $0x18] sm:$0xff]
    %vm113 = vcmask 261120
    %v115 = vsel %vm113, %v101, 0
    %v118 = vsel %vm113, %v102, 0
    %120 = vmatprep.subr.mxu0 0.0
    %121 = vmatpush1.msra.mxu0 0.0
    %122 = vmatprep.subr.mxu0 0.0
    %123 = vmatpush1.msra.mxu0 0.0
    %124 = vmatprep.subr.mxu0 0.0
    %125 = vmatpush1.msra.mxu0 0.0
    %126 = vmatprep.subr.mxu0 0.0
    %127 = vmatpush1.msra.mxu0 0.0
    %128 = vmatprep.subr.mxu0 0.0
    %129 = vmatpush1.msra.mxu0 0.0
    %130 = vmatprep.subr.mxu0 0.0
    %131 = vmatpush1.msra.mxu0 0.0
    %132 = vmatprep.subr.mxu0 0.0
    %133 = vmatpush1.msra.mxu0 0.0
    %134 = vmatprep.subr.mxu0 0.0
    %135 = vmatpush1.msra.mxu0 0.0
    %136 = vmatprep.subr.mxu0 0.0
    %137 = vmatpush1.msra.mxu0 0.0
    %138 = vmatprep.subr.mxu0 0.0
    %139 = vmatpush1.msra.mxu0 0.0
    %140 = vmatprep.subr.mxu0 0.0
    %141 = vmatpush1.msra.mxu0 0.0
    %142 = vmatprep.subr.mxu0 0.0
    %143 = vmatpush1.msra.mxu0 0.0
    %144 = vmatprep.subr.mxu0 0.0
    %145 = vmatpush1.msra.mxu0 %v112
    %146 = vmatprep.subr.mxu0 0.0
    %147 = vmatpush1.msra.mxu0 %v111
    %148 = vmatprep.subr.mxu0 0.0
    %149 = vmatpush1.msra.mxu0 %v110
    %150 = vmatprep.subr.mxu0 0.0
    %151 = vmatpush1.msra.mxu0 %v109
    %152 = vmatprep.subr.mxu0 0.0
    %153 = vmatpush2.msra.mxu0 0.0
    %154 = vmatprep.subr.mxu0 0.0
    %155 = vmatpush2.msra.mxu0 0.0
    %156 = vmatprep.subr.mxu0 0.0
    %157 = vmatpush2.msra.mxu0 0.0
    %158 = vmatprep.subr.mxu0 0.0
    %159 = vmatpush2.msra.mxu0 0.0
    %160 = vmatprep.subr.mxu0 0.0
    %161 = vmatpush2.msra.mxu0 0.0
    %162 = vmatprep.subr.mxu0 0.0
    %163 = vmatpush2.msra.mxu0 0.0
    %164 = vmatprep.subr.mxu0 0.0
    %165 = vmatpush2.msra.mxu0 0.0
    %166 = vmatprep.subr.mxu0 0.0
    %167 = vmatpush2.msra.mxu0 0.0
    %168 = vmatprep.subr.mxu0 0.0
    %169 = vmatpush2.msra.mxu0 0.0
    %170 = vmatprep.subr.mxu0 0.0
    %171 = vmatpush2.msra.mxu0 0.0
    %172 = vmatprep.subr.mxu0 0.0
    %173 = vmatpush2.msra.mxu0 0.0
    %174 = vmatprep.subr.mxu0 0.0
    %175 = vmatpush2.msra.mxu0 0.0
    %176 = vmatprep.subr.mxu0 0.0
    %177 = vmatpush2.msra.mxu0 0.0
    %178 = vmatprep.subr.mxu0 0.0
    %179 = vmatpush2.msra.mxu0 0.0
    %180 = vmatprep.subr.mxu0 0.0
    %181 = vmatpush2.msra.mxu0 0.0
    %182 = vmatprep.subr.mxu0 0.0
    %183 = vmatpush2.msra.mxu0 0.0
    %184 = vmatprep.mubr.f32.mxu0 0.0
    %185 = vmatmul.mubr.f32.gmra.mxu0 %v115
    %v186 = vpop.f32.mrf.mxu0
    %v187 = vadd.f32 0.0, %v186
    %v188 = vpop.f32.mrf.mxu0
    %189 = vmatprep.mubr.f32.mxu0 0.0
    %190 = vmatmul.mubr.f32.gmra.mxu0 %v118
    %v191 = vpop.f32.mrf.mxu0
    %v192 = vadd.f32 0.0, %v191
    %v193 = vpop.f32.mrf.mxu0
    %194 = vdwg.mxu0
    %v195 = vadd.f32 %v107, %v187
    %v196 = vadd.f32 %v108, %v192
    %vm197 = vcmask 523264
    %198 = vst.msk [vmem:[#allocation11] sm:$0xff] %vm197, %v195
    %199 = vst.msk [vmem:[#allocation11 + $0x8] sm:$0xff] %vm197, %v196
    %v200 = vld [vmem:[#allocation12] sm:$0xff]
    %v201 = vld [vmem:[#allocation12 + $0x8] sm:$0xff]
    %v202 = vld [vmem:[#allocation8] sm:$0xff]
    %v203 = vld [vmem:[#allocation8 + $0x8] sm:$0xff]
    %v204 = vld [vmem:[#allocation8 + $0x10] sm:$0xff]
    %v205 = vld [vmem:[#allocation8 + $0x18] sm:$0xff]
    %v206 = vld [vmem:[#allocation10] sm:$0xff]
    %v207 = vld [vmem:[#allocation10 + $0x8] sm:$0xff]
    %v208 = vld [vmem:[#allocation10 + $0x10] sm:$0xff]
    %v209 = vld [vmem:[#allocation10 + $0x18] sm:$0xff]
    %v211 = vsel %vm113, %v103, 0
    %v214 = vsel %vm113, %v104, 0
    %216 = vmatprep.subr.mxu0 0.0
    %217 = vmatpush1.msra.mxu0 0.0
    %218 = vmatprep.subr.mxu0 0.0
    %219 = vmatpush1.msra.mxu0 0.0
    %220 = vmatprep.subr.mxu0 0.0
    %221 = vmatpush1.msra.mxu0 0.0
    %222 = vmatprep.subr.mxu0 0.0
    %223 = vmatpush1.msra.mxu0 0.0
    %224 = vmatprep.subr.mxu0 0.0
    %225 = vmatpush1.msra.mxu0 0.0
    %226 = vmatprep.subr.mxu0 0.0
    %227 = vmatpush1.msra.mxu0 0.0
    %228 = vmatprep.subr.mxu0 0.0
    %229 = vmatpush1.msra.mxu0 0.0
    %230 = vmatprep.subr.mxu0 0.0
    %231 = vmatpush1.msra.mxu0 0.0
    %232 = vmatprep.subr.mxu0 0.0
    %233 = vmatpush1.msra.mxu0 0.0
    %234 = vmatprep.subr.mxu0 0.0
    %235 = vmatpush1.msra.mxu0 0.0
    %236 = vmatprep.subr.mxu0 0.0
    %237 = vmatpush1.msra.mxu0 0.0
    %238 = vmatprep.subr.mxu0 0.0
    %239 = vmatpush1.msra.mxu0 0.0
    %240 = vmatprep.subr.mxu0 0.0
    %241 = vmatpush1.msra.mxu0 %v209
    %242 = vmatprep.subr.mxu0 0.0
    %243 = vmatpush1.msra.mxu0 %v208
    %244 = vmatprep.subr.mxu0 0.0
    %245 = vmatpush1.msra.mxu0 %v207
    %246 = vmatprep.subr.mxu0 0.0
    %247 = vmatpush1.msra.mxu0 %v206
    %248 = vmatprep.subr.mxu0 0.0
    %249 = vmatpush2.msra.mxu0 0.0
    %250 = vmatprep.subr.mxu0 0.0
    %251 = vmatpush2.msra.mxu0 0.0
    %252 = vmatprep.subr.mxu0 0.0
    %253 = vmatpush2.msra.mxu0 0.0
    %254 = vmatprep.subr.mxu0 0.0
    %255 = vmatpush2.msra.mxu0 0.0
    %256 = vmatprep.subr.mxu0 0.0
    %257 = vmatpush2.msra.mxu0 0.0
    %258 = vmatprep.subr.mxu0 0.0
    %259 = vmatpush2.msra.mxu0 0.0
    %260 = vmatprep.subr.mxu0 0.0
    %261 = vmatpush2.msra.mxu0 0.0
    %262 = vmatprep.subr.mxu0 0.0
    %263 = vmatpush2.msra.mxu0 0.0
    %264 = vmatprep.subr.mxu0 0.0
    %265 = vmatpush2.msra.mxu0 0.0
    %266 = vmatprep.subr.mxu0 0.0
    %267 = vmatpush2.msra.mxu0 0.0
    %268 = vmatprep.subr.mxu0 0.0
    %269 = vmatpush2.msra.mxu0 0.0
    %270 = vmatprep.subr.mxu0 0.0
    %271 = vmatpush2.msra.mxu0 0.0
    %272 = vmatprep.subr.mxu0 0.0
    %273 = vmatpush2.msra.mxu0 0.0
    %274 = vmatprep.subr.mxu0 0.0
    %275 = vmatpush2.msra.mxu0 0.0
    %276 = vmatprep.subr.mxu0 0.0
    %277 = vmatpush2.msra.mxu0 0.0
    %278 = vmatprep.subr.mxu0 0.0
    %279 = vmatpush2.msra.mxu0 0.0
    %280 = vmatprep.mubr.f32.mxu0 0.0
    %281 = vmatmul.mubr.f32.gmra.mxu0 %v211
    %v282 = vpop.f32.mrf.mxu0
    %v283 = vadd.f32 0.0, %v282
    %v284 = vpop.f32.mrf.mxu0
    %285 = vmatprep.mubr.f32.mxu0 0.0
    %286 = vmatmul.mubr.f32.gmra.mxu0 %v214
    %v287 = vpop.f32.mrf.mxu0
    %v288 = vadd.f32 0.0, %v287
    %v289 = vpop.f32.mrf.mxu0
    %290 = vdwg.mxu0
    %v292 = vsel %vm113, %v105, 0
    %v295 = vsel %vm113, %v106, 0
    %297 = vmatprep.subr.mxu0 0.0
    %298 = vmatpush1.msra.mxu0 0.0
    %299 = vmatprep.subr.mxu0 0.0
    %300 = vmatpush1.msra.mxu0 0.0
    %301 = vmatprep.subr.mxu0 0.0
    %302 = vmatpush1.msra.mxu0 0.0
    %303 = vmatprep.subr.mxu0 0.0
    %304 = vmatpush1.msra.mxu0 0.0
    %305 = vmatprep.subr.mxu0 0.0
    %306 = vmatpush1.msra.mxu0 0.0
    %307 = vmatprep.subr.mxu0 0.0
    %308 = vmatpush1.msra.mxu0 0.0
    %309 = vmatprep.subr.mxu0 0.0
    %310 = vmatpush1.msra.mxu0 0.0
    %311 = vmatprep.subr.mxu0 0.0
    %312 = vmatpush1.msra.mxu0 0.0
    %313 = vmatprep.subr.mxu0 0.0
    %314 = vmatpush1.msra.mxu0 0.0
    %315 = vmatprep.subr.mxu0 0.0
    %316 = vmatpush1.msra.mxu0 0.0
    %317 = vmatprep.subr.mxu0 0.0
    %318 = vmatpush1.msra.mxu0 0.0
    %319 = vmatprep.subr.mxu0 0.0
    %320 = vmatpush1.msra.mxu0 0.0
    %321 = vmatprep.subr.mxu0 0.0
    %322 = vmatpush1.msra.mxu0 %v205
    %323 = vmatprep.subr.mxu0 0.0
    %324 = vmatpush1.msra.mxu0 %v204
    %325 = vmatprep.subr.mxu0 0.0
    %326 = vmatpush1.msra.mxu0 %v203
    %327 = vmatprep.subr.mxu0 0.0
    %328 = vmatpush1.msra.mxu0 %v202
    %329 = vmatprep.subr.mxu0 0.0
    %330 = vmatpush2.msra.mxu0 0.0
    %331 = vmatprep.subr.mxu0 0.0
    %332 = vmatpush2.msra.mxu0 0.0
    %333 = vmatprep.subr.mxu0 0.0
    %334 = vmatpush2.msra.mxu0 0.0
    %335 = vmatprep.subr.mxu0 0.0
    %336 = vmatpush2.msra.mxu0 0.0
    %337 = vmatprep.subr.mxu0 0.0
    %338 = vmatpush2.msra.mxu0 0.0
    %339 = vmatprep.subr.mxu0 0.0
    %340 = vmatpush2.msra.mxu0 0.0
    %341 = vmatprep.subr.mxu0 0.0
    %342 = vmatpush2.msra.mxu0 0.0
    %343 = vmatprep.subr.mxu0 0.0
    %344 = vmatpush2.msra.mxu0 0.0
    %345 = vmatprep.subr.mxu0 0.0
    %346 = vmatpush2.msra.mxu0 0.0
    %347 = vmatprep.subr.mxu0 0.0
    %348 = vmatpush2.msra.mxu0 0.0
    %349 = vmatprep.subr.mxu0 0.0
    %350 = vmatpush2.msra.mxu0 0.0
    %351 = vmatprep.subr.mxu0 0.0
    %352 = vmatpush2.msra.mxu0 0.0
    %353 = vmatprep.subr.mxu0 0.0
    %354 = vmatpush2.msra.mxu0 0.0
    %355 = vmatprep.subr.mxu0 0.0
    %356 = vmatpush2.msra.mxu0 0.0
    %357 = vmatprep.subr.mxu0 0.0
    %358 = vmatpush2.msra.mxu0 0.0
    %359 = vmatprep.subr.mxu0 0.0
    %360 = vmatpush2.msra.mxu0 0.0
    %361 = vmatprep.mubr.f32.mxu0 0.0
    %362 = vmatmul.mubr.f32.gmra.mxu0 %v292
    %v363 = vpop.f32.mrf.mxu0
    %v364 = vadd.f32 %v283, %v363
    %v365 = vpop.f32.mrf.mxu0
    %366 = vmatprep.mubr.f32.mxu0 0.0
    %367 = vmatmul.mubr.f32.gmra.mxu0 %v295
    %v368 = vpop.f32.mrf.mxu0
    %v369 = vadd.f32 %v288, %v368
    %v370 = vpop.f32.mrf.mxu0
    %371 = vdwg.mxu0
    %v372 = vadd.f32 %v200, %v364
    %v373 = vadd.f32 %v201, %v369
    %374 = vst.msk [vmem:[#allocation12] sm:$0xff] %vm197, %v372
    %375 = vst.msk [vmem:[#allocation12 + $0x8] sm:$0xff] %vm197, %v373
    // Predicated region
    $region46: #{tpu_custom_call.1} parent=1 // pred_check
      _
    $region47: #{tpu_custom_call.1} parent=1 // pred_check_branch
      %377 = sbr.rel (0) target = $region49
    $region48: #{tpu_custom_call.1} parent=1 // pred_region
      %s379 = ssub.s32 256, 256
      %380 = vsyncadd [#allocation4], %s379
      %s381 = sshll.u32 [#allocation11], 4
      %s382 = int_to_ptr.vmem [resolvable:$true] %s381
      %387 = dma.vmem_to_hbm [thread:$0]  %s382, 256, %s5, [#allocation4], 128, 128, 8
    $region49: #{tpu_custom_call.1} parent=1 // pred_fallthru
      _
    // Predicated region
    $region50: #{tpu_custom_call.1} parent=1 // pred_check
      _
    $region51: #{tpu_custom_call.1} parent=1 // pred_check_branch
      %389 = sbr.rel (0) target = $region53
    $region52: #{tpu_custom_call.1} parent=1 // pred_region
      %s391 = ssub.s32 256, 256
      %392 = vsyncadd [#allocation13], %s391
      %s393 = sshll.u32 [#allocation12], 4
      %s394 = int_to_ptr.vmem [resolvable:$true] %s393
      %399 = dma.vmem_to_hbm [thread:$0]  %s394, 256, %s6, [#allocation13], 128, 128, 8
    $region53: #{tpu_custom_call.1} parent=1 // pred_fallthru
      _
    // Predicated region
    $region54: #{tpu_custom_call.1} parent=1 // pred_check
      _
    $region55: #{tpu_custom_call.1} parent=1 // pred_check_branch
      %401 = sbr.rel (0) target = $region57
    $region56: #{tpu_custom_call.1} parent=1 // pred_region
      %402 = dma.done [#allocation4], 256
    $region57: #{tpu_custom_call.1} parent=1 // pred_fallthru
      _
    // Predicated region
    $region58: #{tpu_custom_call.1} parent=1 // pred_check
      _
    $region59: #{tpu_custom_call.1} parent=1 // pred_check_branch
      %404 = sbr.rel (0) target = $region61
    $region60: #{tpu_custom_call.1} parent=1 // pred_region
      %405 = dma.done [#allocation13], 256
    $region61: #{tpu_custom_call.1} parent=1 // pred_fallthru
      _
    %406 = vsyncpa [#allocation3], 1
    %407 = vsyncpa [#allocation6], 1
    %408 = vsyncpa [#allocation9], 1
    %409 = vsyncpa [#allocation4], 1
    %410 = vsyncpa [#allocation13], 1

</llo_original>
